<compile_context>
chip_gen: v7x
topology: tpu7x:2x2x1
jax: 0.10.0
libtpu: 0.0.40
codegen_flags: <defaults>
</compile_context>

<pallas_src>
import functools

import numpy as np
import jax
import jax.numpy as jnp
from jax.experimental import pallas as pl
from jax.experimental.pallas import tpu as pltpu

LANE = 128       # TPU lane width (last dim of every tile)
SUBLANE = 8      # f32 sublane count


def _cdiv(a, b):
    return -(-a // b)


def _round_up(x, m):
    return _cdiv(x, m) * m


@functools.lru_cache(maxsize=None)
def _vmem_limit_bytes():
    # Scale scoped-VMEM with the generation: v5e/v6e (128 MiB phys) -> 64 MiB,
    # v7x (64 MiB phys) -> 32 MiB.  Conservative fallback if the query fails.
    try:
        cap = int(pltpu.get_tpu_info().vmem_capacity_bytes)
    except Exception:
        cap = 64 * 1024 * 1024
    return max(32 * 1024 * 1024, min(cap // 2, 96 * 1024 * 1024))


def _pick_tile_rows(rows, per_row_bytes, vmem_limit):
    """Largest row-tile fitting ~75% of the VMEM budget; keep grid >= 2 rows-wise."""
    budget = (vmem_limit * 3) // 4
    tile_r = max(SUBLANE, (budget // per_row_bytes) // SUBLANE * SUBLANE)
    if rows > 2 * SUBLANE:
        # keep at least 2 grid steps so the v7x megacore can split the row axis
        tile_r = min(tile_r, _round_up(_cdiv(rows, 2), SUBLANE))
    return min(tile_r, _round_up(rows, SUBLANE))


# --------------------- T == 0 path: QCFS quantized activation ----------------
def _qcfs_kernel(scal_ref, x_ref, o_ref, *, L):
    # scal_ref (SMEM): [thresh]
    thr = scal_ref[0]
    x = x_ref[...].astype(jnp.float32) / thr            # faithful x / thresh
    x = jnp.clip(x, 0.0, 1.0)
    q = jnp.floor(x * L + 0.5)
    o_ref[...] = (q / L * thr).astype(o_ref.dtype)


def qcfs_forward(x, thresh, L):
    """T == 0 (ANN) path: clamp(x/thr, 0, 1) -> floor(x*L+0.5)/L -> *thr."""
    shape = x.shape
    dtype = x.dtype
    total = int(np.prod(shape))
    isz = jnp.dtype(dtype).itemsize

    if total % LANE == 0:
        rows = total // LANE
        x2d = x.reshape(rows, LANE)                      # no pad copy
        padded = False
    else:
        # TODO(synk): ragged tail (numel % 128 != 0) still needs one pad copy.
        rows = _cdiv(total, LANE)
        x2d = jnp.pad(x.reshape(-1), (0, rows * LANE - total)).reshape(rows, LANE)
        padded = True

    limit = _vmem_limit_bytes()
    tile_r = _pick_tile_rows(rows, per_row_bytes=4 * LANE * isz, vmem_limit=limit)
    grid = (_cdiv(rows, tile_r),)                        # ragged last block is masked

    thr = thresh.reshape(-1)[0].astype(jnp.float32).reshape(1)

    out = pl.pallas_call(
        functools.partial(_qcfs_kernel, L=float(L)),
        out_shape=jax.ShapeDtypeStruct((rows, LANE), dtype),
        grid=grid,
        in_specs=[
            pl.BlockSpec(memory_space=pltpu.MemorySpace.SMEM),   # [thresh]
            pl.BlockSpec((tile_r, LANE), lambda i: (i, 0)),      # activations
        ],
        out_specs=pl.BlockSpec((tile_r, LANE), lambda i: (i, 0)),
        compiler_params=pltpu.CompilerParams(
            dimension_semantics=("parallel",), vmem_limit_bytes=limit),
        cost_estimate=pl.CostEstimate(
            flops=int(6 * total), transcendentals=int(total),
            bytes_accessed=int(2 * total * isz)),
    )(thr, x2d)

    if padded:
        return out.reshape(-1)[:total].reshape(shape)
    return out.reshape(shape)


# --------------------- T > 0 path: IF neuron with progressive pruning --------
def _scores_kernel(x_ref, s_ref):
    # magnitude_scores = ||x||_2 over time, accumulated in a resident f32 block.
    t = pl.program_id(1)

    @pl.when(t == 0)
    def _():
        s_ref[...] = jnp.zeros_like(s_ref)

    x = x_ref[0].astype(jnp.float32)
    s_ref[...] += x * x

    @pl.when(t == pl.num_programs(1) - 1)
    def _():
        s_ref[...] = jnp.sqrt(s_ref[...])


def _if_kernel(scal_ref, x_ref, o_ref, mem_ref):
    # scal_ref (SMEM): [thresh, _] ; membrane carried in VMEM scratch across T.
    t = pl.program_id(1)
    thr = scal_ref[0]

    @pl.when(t == 0)
    def _():
        mem_ref[...] = jnp.full(mem_ref.shape, 0.5, jnp.float32) * thr

    mem = mem_ref[...] + x_ref[0].astype(jnp.float32)
    spike = jnp.where(mem >= thr, thr, 0.0)              # ZIF fwd: (mem-thr>=0)*thr
    mem_ref[...] = mem - spike
    o_ref[0] = spike.astype(o_ref.dtype)


def _if_prune_kernel(scal_ref, scores_ref, x_ref, o_ref, mem_ref):
    # scal_ref (SMEM): [thresh, quantile_threshold]
    t = pl.program_id(1)
    thr = scal_ref[0]

    @pl.when(t == 0)
    def _():
        mem_ref[...] = jnp.full(mem_ref.shape, 0.5, jnp.float32) * thr

    mem = mem_ref[...] + x_ref[0].astype(jnp.float32)
    keep = scores_ref[...] > scal_ref[1]                 # prune_mask = scores > q
    spike = jnp.where(jnp.logical_and(mem >= thr, keep), thr, 0.0)
    mem_ref[...] = mem - spike
    o_ref[0] = spike.astype(o_ref.dtype)


def progressive_pruning_if_forward(
    x_seq,
    *,
    thresh,
    T,
    L=8,
    initial_pruning_ratio=0.0,
    final_pruning_ratio=0.3,
    pruning_schedule_steps=1000,
    current_step=1,          # value of self.current_step AFTER the += 1
):
    if T == 0:
        return qcfs_forward(x_seq, thresh, L)

    TB = x_seq.shape[0]
    assert TB % T == 0, "leading dim must be divisible by T"
    B = TB // T
    F = B * int(np.prod(x_seq.shape[1:]))
    dtype = x_seq.dtype
    isz = jnp.dtype(dtype).itemsize

    # Cosine-annealed pruning ratio (host-side schedule, mirrors np.cos usage).
    progress = min(current_step / pruning_schedule_steps, 1.0)
    ratio = initial_pruning_ratio + (final_pruning_ratio - initial_pruning_ratio) * (
        1.0 - np.cos(np.pi * progress)) / 2.0
    apply_mask = ratio > 0.0
    if apply_mask:
        # PyTorch's spike.view(B,-1) * mask[None] broadcast needs B == 1.
        assert B == 1, "pruning-mask path requires per-timestep batch of 1"

    # Lane-dense layout: [T, R, 128]; keep the input dtype (no .astype copy).
    if F % LANE == 0:
        R = F // LANE
        x3 = x_seq.reshape(T, R, LANE)                   # no pad copy
        padded = False
    else:
        # TODO(synk): ragged feature count still needs one pad copy.
        R = _cdiv(F, LANE)
        x3 = jnp.pad(x_seq.reshape(T, F), ((0, 0), (0, R * LANE - F)))
        x3 = x3.reshape(T, R, LANE)
        padded = True

    limit = _vmem_limit_bytes()
    # per-row VMEM: x in/out double-buffered + f32 mem scratch (+ resident scores).
    per_row = LANE * (4 * isz + 4 + (8 if apply_mask else 0))
    tile_r = _pick_tile_rows(R, per_row_bytes=per_row, vmem_limit=limit)
    grid = (_cdiv(R, tile_r), T)
    cparams = pltpu.CompilerParams(
        dimension_semantics=("parallel", "arbitrary"), vmem_limit_bytes=limit)

    thr = thresh.reshape(-1)[0].astype(jnp.float32)

    if apply_mask:
        # Pass 1: L2 magnitude scores over time (resident accumulator over T).
        scores = pl.pallas_call(
            _scores_kernel,
            out_shape=jax.ShapeDtypeStruct((R, LANE), jnp.float32),
            grid=grid,
            in_specs=[pl.BlockSpec((1, tile_r, LANE), lambda i, t: (t, i, 0))],
            out_specs=pl.BlockSpec((tile_r, LANE), lambda i, t: (i, 0)),
            compiler_params=cparams,
            cost_estimate=pl.CostEstimate(
                flops=int(2 * T * R * LANE), transcendentals=int(R * LANE),
                bytes_accessed=int(T * R * LANE * isz + R * LANE * 4)),
        )(x3)
        scores_flat = scores.reshape(-1)
        if padded:
            scores_flat = scores_flat[:F]
        # TODO(synk): torch.quantile is a global sort; done with XLA between passes.
        qthr = jnp.quantile(scores_flat, ratio).astype(jnp.float32)
        scal = jnp.stack([thr, qthr])
        kernel = _if_prune_kernel
        in_specs = [
            pl.BlockSpec(memory_space=pltpu.MemorySpace.SMEM),         # [thr, q]
            pl.BlockSpec((tile_r, LANE), lambda i, t: (i, 0)),         # scores
            pl.BlockSpec((1, tile_r, LANE), lambda i, t: (t, i, 0)),   # x[t]
        ]
        args = (scal, scores, x3)
    else:
        scal = jnp.stack([thr, jnp.float32(0.0)])
        kernel = _if_kernel
        in_specs = [
            pl.BlockSpec(memory_space=pltpu.MemorySpace.SMEM),
            pl.BlockSpec((1, tile_r, LANE), lambda i, t: (t, i, 0)),
        ]
        args = (scal, x3)

    out3 = pl.pallas_call(
        kernel,
        out_shape=jax.ShapeDtypeStruct((T, R, LANE), dtype),
        grid=grid,
        in_specs=in_specs,
        out_specs=pl.BlockSpec((1, tile_r, LANE), lambda i, t: (t, i, 0)),
        scratch_shapes=[pltpu.VMEM((tile_r, LANE), jnp.float32)],      # membrane
        compiler_params=cparams,
        cost_estimate=pl.CostEstimate(
            flops=int(5 * T * R * LANE), transcendentals=0,
            bytes_accessed=int(2 * T * R * LANE * isz)),
    )(*args)

    if padded:
        return out3.reshape(T, R * LANE)[:, :F].reshape(x_seq.shape)
    return out3.reshape(x_seq.shape)                     # merge temporal dim back


# ------------------------------------ demo -----------------------------------
if __name__ == "__main__":
    key = jax.random.PRNGKey(0)
    k1, k2 = jax.random.split(key)
    thresh = jnp.array([8.0], jnp.float32)               # nn.Parameter([thresh])

    # --- T == 0 (module default): QCFS quantized activation ------------------
    x_ann = jax.random.normal(k1, (2, 4, 16, 16), jnp.float32) * 4.0
    y_ann = jax.block_until_ready(qcfs_forward(x_ann, thresh, L=8))

    xr = np.asarray(x_ann, np.float32) / 8.0
    xr = np.clip(xr, 0.0, 1.0)
    xr = np.floor(xr * 8.0 + 0.5) / 8.0 * 8.0
    assert np.allclose(np.asarray(y_ann), xr, atol=1e-5), "QCFS mismatch"

    # --- T > 0: IF neuron with progressive pruning (B == 1) ------------------
    T, B, C, H, W = 4, 1, 4, 8, 8
    step = 500                                            # mid-schedule, ratio=0.15
    x_snn = jax.random.normal(k2, (T * B, C, H, W), jnp.float32) * 4.0 + 2.0
    y_snn = jax.block_until_ready(
        progressive_pruning_if_forward(x_snn, thresh=thresh, T=T, L=8,
                                       current_step=step))

    # numpy reference of the PyTorch forward at current_step == `step`
    xs = np.asarray(x_snn, np.float32).reshape(T, B, C, H, W)
    scores_ref = np.linalg.norm(xs.reshape(T, -1), axis=0)
    progress = min(step / 1000.0, 1.0)
    ratio = 0.0 + (0.3 - 0.0) * (1.0 - np.cos(np.pi * progress)) / 2.0
    q = np.quantile(scores_ref, ratio)
    mask = (scores_ref > q).astype(np.float32)
    mem = 0.5 * 8.0
    outs = []
    for t in range(T):
        mem = mem + xs[t]
        spike = (mem - 8.0 >= 0.0).astype(np.float32) * 8.0
        spike = (spike.reshape(B, -1) * mask[None, :]).reshape(spike.shape)
        mem = mem - spike
        outs.append(spike)
    ref = np.stack(outs, axis=0).reshape(T * B, C, H, W)
    assert np.allclose(np.asarray(y_snn), ref, atol=1e-5), "IF/pruning mismatch"

    print("KERNEL_OK")
</pallas_src>

<mosaic_0001>
module attributes {stable_mosaic.version = 11 : i64} {
  func.func @_qcfs_kernel(%arg0: i32, %arg1: memref<1xf32, #tpu.memory_space<smem>>, %arg2: memref<16x128xf32, #tpu.memory_space<vmem>>, %arg3: memref<16x128xf32, #tpu.memory_space<vmem>>) attributes {dimension_semantics = [#tpu.dimension_semantics<parallel>], iteration_bounds = array<i64: 1>, scalar_prefetch = 0 : i64, scratch_operands = 0 : i64, tpu.core_type = #tpu.core_type<tc>, window_params = [{transform_indices = @transform_0, window_bounds = array<i64: 1>}, {transform_indices = @transform_1, window_bounds = array<i64: 16, 128>}, {transform_indices = @transform_2, window_bounds = array<i64: 16, 128>}]} {
    %c0 = arith.constant 0 : index
    %0 = memref.load %arg1[%c0] : memref<1xf32, #tpu.memory_space<smem>>
    %c0_0 = arith.constant 0 : index
    %c0_1 = arith.constant 0 : index
    %1 = vector.load %arg2[%c0_0, %c0_1] : memref<16x128xf32, #tpu.memory_space<vmem>>, vector<16x128xf32>
    %2 = vector.broadcast %0 : f32 to vector<16x128xf32>
    %3 = arith.divf %1, %2 : vector<16x128xf32>
    %cst = arith.constant 0.000000e+00 : f32
    %cst_2 = arith.constant 1.000000e+00 : f32
    %4 = vector.broadcast %cst : f32 to vector<16x128xf32>
    %5 = arith.maximumf %4, %3 : vector<16x128xf32>
    %6 = vector.broadcast %cst_2 : f32 to vector<16x128xf32>
    %7 = arith.minimumf %6, %5 : vector<16x128xf32>
    %cst_3 = arith.constant 8.000000e+00 : f32
    %8 = vector.broadcast %cst_3 : f32 to vector<16x128xf32>
    %9 = arith.mulf %7, %8 : vector<16x128xf32>
    %cst_4 = arith.constant 5.000000e-01 : f32
    %10 = vector.broadcast %cst_4 : f32 to vector<16x128xf32>
    %11 = arith.addf %9, %10 : vector<16x128xf32>
    %12 = math.floor %11 : vector<16x128xf32>
    %cst_5 = arith.constant 8.000000e+00 : f32
    %13 = vector.broadcast %cst_5 : f32 to vector<16x128xf32>
    %14 = arith.divf %12, %13 : vector<16x128xf32>
    %15 = vector.broadcast %0 : f32 to vector<16x128xf32>
    %16 = arith.mulf %14, %15 : vector<16x128xf32>
    %c0_6 = arith.constant 0 : index
    %c0_7 = arith.constant 0 : index
    %17 = vector.load %arg3[%c0_6, %c0_7] : memref<16x128xf32, #tpu.memory_space<vmem>>, vector<16x128xf32>
    tpu.vector_store %arg3[%c0_6, %c0_7], %16 {strides = array<i32>} : memref<16x128xf32, #tpu.memory_space<vmem>>, vector<16x128xf32>,
    return
  }
  func.func @transform_0(%arg0: i32) -> i32 {
    %c0_i32 = arith.constant 0 : i32
    %c0_i32_0 = arith.constant 0 : i32
    return %c0_i32 : i32
  }
  func.func @transform_1(%arg0: i32) -> (i32, i32) {
    %c0_i32 = arith.constant 0 : i32
    %c0_i32_0 = arith.constant 0 : i32
    return %arg0, %c0_i32 : i32, i32
  }
  func.func @transform_2(%arg0: i32) -> (i32, i32) {
    %c0_i32 = arith.constant 0 : i32
    %c0_i32_0 = arith.constant 0 : i32
    return %arg0, %c0_i32 : i32, i32
  }
}

</mosaic_0001>

<llo_original>
// kernel: tpu_custom_call.1
$region0: #{tpu_custom_call.1}
  #allocation0 [shape = 'u32[]', space=smem, size = 0x4, offset = 0x4, fixed_abs, tag = 'smem constant byte address 0x4 - core index']
  #allocation1 [shape = 'u32[144,128]{1,0:T(1,128)}', space=vmem, size = 0x12000, scoped, tag = 'internal scratch']
  #allocation2 [shape = 'f32[1]{0:T(128)S(6)}', space=smem, size = 0x200, scoped, tag = 'scoped memory for tpu_custom_call.1']
  %s0 = inlined_call_operand.<no memory space> [shape: f32[1], index: 0, kind: input, shape index: {}]
  %s1 = inlined_call_operand.hbm [shape: f32[16,128], index: 1, kind: input, shape index: {}]
  %s2 = inlined_call_operand.hbm [shape: f32[16,128], index: 2, kind: output, shape index: {}]
  %s3 = sld [smem:[#allocation0]]
  $region22: #{tpu_custom_call.1} parent=0
    _
  %s5 = ssub.s32 1, %s3
  %s6 = scalar_select 0, %s5, %s3
  %7 = sst [smem:[#allocation2]] %s0
  $region1: #{tpu_custom_call.1} parent=0
    #allocation3 [shape = 'u8[8192]{0}', space=vmem, size = 0x2000, scoped, tag = 'input window, operand 1, single buffered']
    #allocation4 [shape = 's32[1]{0}', space=sflag, size = 0x4, scoped, tag = 'scoped memory for tpu_custom_call.1']
    #allocation5 [shape = 's32[1]{0}', space=sflag, size = 0x4, scoped, tag = 'scoped memory for tpu_custom_call.1']
    #allocation6 [shape = 'u8[8192]{0}', space=vmem, size = 0x2000, scoped, tag = 'output window, operand 0, single buffered']
    %8 = vsyncpa [#allocation4], 0
    %9 = vsyncpa [#allocation5], 0
    // Predicated region
    $region2: #{tpu_custom_call.1} parent=1 // pred_check
      _
    $region3: #{tpu_custom_call.1} parent=1 // pred_check_branch
      %11 = sbr.rel (0) target = $region5
    $region4: #{tpu_custom_call.1} parent=1 // pred_region
      _
    $region5: #{tpu_custom_call.1} parent=1 // pred_fallthru
      _
    // Predicated region
    $region6: #{tpu_custom_call.1} parent=1 // pred_check
      _
    $region7: #{tpu_custom_call.1} parent=1 // pred_check_branch
      %13 = sbr.rel (0) target = $region9
    $region8: #{tpu_custom_call.1} parent=1 // pred_region
      %s15 = ssub.s32 256, 256
      %16 = vsyncadd [#allocation4], %s15
      %s17 = sshll.u32 [#allocation3], 4
      %s18 = int_to_ptr.vmem [resolvable:$true] %s17
      %23 = dma.hbm_to_vmem [thread:$0]  %s1, 256, %s18, [#allocation4], 128, 128, 8
    $region9: #{tpu_custom_call.1} parent=1 // pred_fallthru
      _
    // Predicated region
    $region10: #{tpu_custom_call.1} parent=1 // pred_check
      _
    $region11: #{tpu_custom_call.1} parent=1 // pred_check_branch
      %25 = sbr.rel (0) target = $region13
    $region12: #{tpu_custom_call.1} parent=1 // pred_region
      %26 = dma.done [#allocation4], 256
    $region13: #{tpu_custom_call.1} parent=1 // pred_fallthru
      _
    %s27 = sld [smem:[#allocation2]]
    %v28 = vld [vmem:[#allocation3] sm:$0xff]
    %v29 = vld [vmem:[#allocation3 + $0x8] sm:$0xff]
    %v30 = vstv %s27
    %v31 = vrcp.pop %v30
    %v32 = vmul.f32 %v28, %v31
    %v33 = vmul.f32 %v29, %v31
    %v34 = vmax.f32 %v32, 0.0
    %v35 = vmax.f32 %v33, 0.0
    %v36 = vmin.f32 %v34, 1.0
    %v37 = vmin.f32 %v35, 1.0
    %v38 = vmul.f32 %v36, 8.0
    %v39 = vmul.f32 %v37, 8.0
    %v40 = vadd.f32 %v38, 0.5
    %v41 = vadd.f32 %v39, 0.5
    %v42 = vfloor.f32 %v40
    %v43 = vfloor.f32 %v41
    %v44 = vrcp.pop 8.0
    %v45 = vmul.f32 %v42, %v44
    %v46 = vmul.f32 %v43, %v44
    %v47 = vmul.f32 %v45, %v30
    %v48 = vmul.f32 %v46, %v30
    %49 = vst [vmem:[#allocation6] sm:$0xff] %v47
    %50 = vst [vmem:[#allocation6 + $0x8] sm:$0xff] %v48
    // Predicated region
    $region14: #{tpu_custom_call.1} parent=1 // pred_check
      _
    $region15: #{tpu_custom_call.1} parent=1 // pred_check_branch
      %52 = sbr.rel (0) target = $region17
    $region16: #{tpu_custom_call.1} parent=1 // pred_region
      %s54 = ssub.s32 256, 256
      %55 = vsyncadd [#allocation5], %s54
      %s56 = sshll.u32 [#allocation6], 4
      %s57 = int_to_ptr.vmem [resolvable:$true] %s56
      %62 = dma.vmem_to_hbm [thread:$0]  %s57, 256, %s2, [#allocation5], 128, 128, 8
    $region17: #{tpu_custom_call.1} parent=1 // pred_fallthru
      _
    // Predicated region
    $region18: #{tpu_custom_call.1} parent=1 // pred_check
      _
    $region19: #{tpu_custom_call.1} parent=1 // pred_check_branch
      %64 = sbr.rel (0) target = $region21
    $region20: #{tpu_custom_call.1} parent=1 // pred_region
      %65 = dma.done [#allocation5], 256
    $region21: #{tpu_custom_call.1} parent=1 // pred_fallthru
      _
    %66 = vsyncpa [#allocation4], 1
    %67 = vsyncpa [#allocation5], 1

</llo_original>
